<compile_context>
chip_gen: v5e
topology: v5e:2x2
jax: 0.10.0
libtpu: 0.0.40
codegen_flags: <defaults>
</compile_context>

<pallas_src>
import functools

import jax
import jax.numpy as jnp
from jax.experimental import pallas as pl
from jax.experimental.pallas import tpu as pltpu


def _ceil_div(a, b):
    return -(-a // b)


# ----------------------------------------------------------------------------
# Pallas kernel: per-scale MLP (fused convs + folded BN/bias + ReLU + max over K)
# ----------------------------------------------------------------------------
def _msg_mlp_kernel(g_ref, wA_ref, wB_ref, wC_ref, bias_ref, out_ref, *, K):
    R, _ = g_ref.shape            # R = TM*K flattened rows
    TM = out_ref.shape[0]
    c0 = wB_ref.shape[0]
    c1 = wC_ref.shape[0]
    c3 = wC_ref.shape[1]
    c2 = wA_ref.shape[1] - 2 * c0
    f32 = jnp.float32

    x = g_ref[...]                                   # [R, Cin]
    bias = bias_ref[...]                             # [4, cmax] (f32)
    thr0 = bias[0:1, :c0]        # = -b0                  (j=0 ReLU threshold)
    thr1 = bias[1:2, :c1]        # = -(b0 @ sum_t wB_t + b1)   (j=1 threshold)
    b2 = bias[2:3, :c2]          # j=2 bias, applied after the K-max
    b3 = bias[3:4, :c3]          # j=3 bias + forwarded constants, after K-max

    # j=0 taps and the j=2 pointwise conv fused into ONE wide MXU matmul over
    # all TM*K rows:  yA = [x@w0a | x@w0b | x@w2].
    yA = jnp.dot(x, wA_ref[...], preferred_element_type=f32)     # [R, 2c0+c2]

    # j=0 : Conv2d(Cin, c0, (2,1)) via a full-R sublane roll (roll by R-1 ==
    # shift "up" one row, i.e. row r sees row r+1).  Rows whose second tap
    # wraps into the next group (r % K == K-1, incl. the block wrap) only feed
    # y1/y3 rows that the [:, :K-3] slice below drops -> no masking needed.
    a = yA[:, :c0] + pltpu.roll(yA[:, c0:2 * c0], shift=R - 1, axis=0)
    # relu(a + b0) == max(a, -b0) + b0 ; the +b0 is folded forward into thr1/b3.
    y0 = jnp.maximum(a, thr0)                                    # [R, c0]

    # j=1 : Conv2d(c0, c1, (3,1)); three taps fused into one [c0, 3c1] matmul,
    # combined with two more sublane rolls (XLU slot, off the VPU path).
    q = jnp.dot(y0.astype(wB_ref.dtype), wB_ref[...],
                preferred_element_type=f32)                      # [R, 3c1]
    s = (q[:, :c1]
         + pltpu.roll(q[:, c1:2 * c1], shift=R - 1, axis=0)
         + pltpu.roll(q[:, 2 * c1:], shift=R - 2, axis=0))
    # relu(s_true + b1) == max(s, thr1) + const ; const folded into b3.
    y1 = jnp.maximum(s, thr1)                                    # [R, c1]

    # j=3 : Conv2d(c1, c3, 1); its bias is applied after the K-max.
    y3 = jnp.dot(y1.astype(wC_ref.dtype), wC_ref[...],
                 preferred_element_type=f32)                     # [R, c3]

    # torch: relu(cat([t, y3], dim=K)).max(K).  Per-channel bias adds and the
    # ReLUs are monotone, so they are hoisted across the max and run on TM rows
    # instead of TM*K rows.  (K % 8 == 0 keeps these reshapes layout-free.)
    m_t = jnp.max(yA[:, 2 * c0:].reshape(TM, K, c2), axis=1) + b2
    m_y = jnp.max(y3.reshape(TM, K, c3)[:, :K - 3, :], axis=1) + b3
    out_ref[...] = jnp.maximum(jnp.maximum(m_t, m_y), 0.0)


def _tpu_defaults():
    """(generation, compute_dtype, rows_per_step_target, tm_cap, vmem_limit)."""
    gen = None
    try:
        dev = jax.devices()[0]
        if dev.platform == "tpu":
            kind = dev.device_kind.lower()
            if "v7" in kind or "tpu7" in kind or "7x" in kind:
                gen = "v7"
            elif "v6" in kind:
                gen = "v6"
            elif "v5" in kind:
                gen = "v5"
    except Exception:
        gen = None
    if gen == "v7":   # 64 MiB physical VMEM, 2 TensorCores, bf16-native VPU
        return gen, jnp.bfloat16, 8192, 512, 48 << 20
    if gen == "v6":   # 128 MiB VMEM, bf16-native VPU: big tiles
        return gen, jnp.bfloat16, 8192, 512, 64 << 20
    if gen == "v5":   # 16 MiB scoped-VMEM default, no bf16 VPU: f32, small tiles
        return gen, jnp.float32, 2048, 256, 64 << 20
    return gen, jnp.float32, 2048, 256, 64 << 20


def run_msg_mlp(g, packed, *, compute_dtype=None, row_target=None,
                tm_cap=None, vmem_limit_bytes=None):
    """g: [M, K, Cin] float32 grouped features -> [M, c_last] (ReLU'd max over K)."""
    wA, wB, wC, bias = packed
    M, K, C = g.shape
    assert K >= 4, "the (2,1)+(3,1) conv stack needs nsample >= 4"
    c0 = wB.shape[0]
    c1 = wC.shape[0]
    c3 = wC.shape[1]
    c2 = wA.shape[1] - 2 * c0
    assert c2 == c3, "torch.cat along the K dim requires matching channels"
    c_last = c3

    gen, dt, rt, cap, vlim = _tpu_defaults()
    compute_dtype = compute_dtype or dt
    row_target = row_target or rt
    tm_cap = tm_cap or cap
    vmem_limit_bytes = vmem_limit_bytes or vlim

    # Rows-per-step = TM*K: big enough to amortize the ~0.35us/step grid
    # overhead, small enough for the generation's VMEM budget.
    TM = min(tm_cap, max(8, (row_target // K) // 8 * 8))
    if M <= TM:
        TM = M
    # v7x has two TensorCores: make sure the "parallel" grid axis has >=2
    # steps so both cores get work (halve the block instead of one big block).
    if gen == "v7" and M >= 16 and _ceil_div(M, TM) < 2:
        TM = _ceil_div(_ceil_div(M, 2), 8) * 8
    M_pad = _ceil_div(M, TM) * TM
    num_blocks = M_pad // TM

    if M_pad != M:
        g = jnp.pad(g, ((0, M_pad - M), (0, 0), (0, 0)))

    g2 = g.reshape(M_pad * K, C).astype(compute_dtype)
    wA = wA.astype(compute_dtype)
    wB = wB.astype(compute_dtype)
    wC = wC.astype(compute_dtype)
    bias = bias.astype(jnp.float32)

    r_blk = TM * K
    rows = M_pad * K

    def _nbytes(a):
        return int(a.size) * a.dtype.itemsize

    flops = 2 * rows * (C * (2 * c0 + c2) + c0 * 3 * c1 + c1 * c3)
    bytes_accessed = (_nbytes(g2) + _nbytes(wA) + _nbytes(wB) + _nbytes(wC)
                      + _nbytes(bias) + M_pad * c_last * 4)

    out = pl.pallas_call(
        functools.partial(_msg_mlp_kernel, K=K),
        out_shape=jax.ShapeDtypeStruct((M_pad, c_last), jnp.float32),
        grid=(num_blocks,),
        in_specs=[
            pl.BlockSpec((r_blk, C), lambda m: (m, 0)),
            pl.BlockSpec(wA.shape, lambda m: (0, 0)),     # resident weights
            pl.BlockSpec(wB.shape, lambda m: (0, 0)),
            pl.BlockSpec(wC.shape, lambda m: (0, 0)),
            pl.BlockSpec(bias.shape, lambda m: (0, 0)),
        ],
        out_specs=pl.BlockSpec((TM, c_last), lambda m: (m, 0)),
        compiler_params=pltpu.CompilerParams(
            dimension_semantics=("parallel",),
            vmem_limit_bytes=int(vmem_limit_bytes)),
        cost_estimate=pl.CostEstimate(
            flops=int(flops), transcendentals=0,
            bytes_accessed=int(bytes_accessed)),
    )(g2, wA, wB, wC, bias)
    return out[:M]


# ----------------------------------------------------------------------------
# Plain-JAX glue: sampling / grouping (data-dependent gathers)
# ----------------------------------------------------------------------------
def square_distance(src, dst):
    # src [B, S, 3], dst [B, N, 3] -> [B, S, N]
    return jnp.sum((src[:, :, None, :] - dst[:, None, :, :]) ** 2, axis=-1)


def index_points(points, idx):
    # points [B, N, C], idx [B, ...] -> [B, ..., C]
    return jax.vmap(lambda p, i: p[i])(points, idx)


def farthest_point_sample(xyz, npoint):
    # TODO(synk): torch uses torch.randint for the first centroid; we start at
    # index 0 for determinism (semantics otherwise identical).
    B, N, _ = xyz.shape

    def body(i, carry):
        centroids, distance, farthest = carry
        centroids = centroids.at[:, i].set(farthest)
        centroid = jax.vmap(lambda p, f: p[f])(xyz, farthest)[:, None, :]  # [B,1,3]
        dist = jnp.sum((xyz - centroid) ** 2, axis=-1)                     # [B,N]
        distance = jnp.minimum(distance, dist)
        farthest = jnp.argmax(distance, axis=-1).astype(jnp.int32)
        return centroids, distance, farthest

    init = (jnp.zeros((B, npoint), jnp.int32),
            jnp.full((B, N), 1e10, jnp.float32),
            jnp.zeros((B,), jnp.int32))
    centroids, _, _ = jax.lax.fori_loop(0, npoint, body, init)
    return centroids


def query_ball_point(radius, nsample, xyz, new_xyz):
    B, N, _ = xyz.shape
    S = new_xyz.shape[1]
    sqrdists = square_distance(new_xyz, xyz)                                # [B,S,N]
    group_idx = jnp.broadcast_to(jnp.arange(N, dtype=jnp.int32), (B, S, N))
    group_idx = jnp.where(sqrdists > radius ** 2, jnp.int32(N), group_idx)
    group_idx = jnp.sort(group_idx, axis=-1)[:, :, :nsample]
    group_first = group_idx[:, :, 0:1]
    group_idx = jnp.where(group_idx == N, group_first, group_idx)
    return group_idx


# ----------------------------------------------------------------------------
# Parameter construction (deterministic, synthetic).  BatchNorm is applied in
# eval mode with synthetic running stats and folded into the conv weights; the
# biases are refactored (exact identities) so the kernel needs no per-row adds.
# ----------------------------------------------------------------------------
def init_params(key, in_channel, mlp_list):
    Cin = in_channel + 3
    eps = 1e-5
    params = []
    for mlp in mlp_list:
        c0, c1, c2, c3 = mlp
        assert c2 == c3, "torch.cat along the K dim requires matching channels"
        specs = [(c0, Cin, 2),   # j=0: Conv2d(Cin, c0, (2,1))
                 (c1, c0, 3),    # j=1: Conv2d(c0, c1, (3,1))
                 (c2, Cin, 1),   # j=2: Conv2d(Cin, c2, 1)
                 (c3, c1, 1)]    # j=3: Conv2d(c1, c3, 1)
        eff = []
        for (co, ci, kh) in specs:
            key, k1, k2, k3, k4, k5 = jax.random.split(key, 6)
            w = 0.1 * jax.random.normal(k1, (co, ci, kh, 1), jnp.float32)
            b = 0.1 * jax.random.normal(k2, (co,), jnp.float32)
            gamma = 1.0 + 0.1 * jax.random.normal(k3, (co,), jnp.float32)
            beta = 0.1 * jax.random.normal(k4, (co,), jnp.float32)
            rmean = 0.05 * jax.random.normal(k5, (co,), jnp.float32)
            rvar = jnp.ones((co,), jnp.float32)
            scale = gamma / jnp.sqrt(rvar + eps)
            eff.append((w * scale[:, None, None, None],
                        (b - rmean) * scale + beta))
        (w0, b0), (w1, b1), (w2, b2), (w3, b3) = eff

        # Fused / packed forms for the kernel.
        wA = jnp.concatenate([w0[:, :, 0, 0].T, w0[:, :, 1, 0].T,
                              w2[:, :, 0, 0].T], axis=1)          # [Cin, 2c0+c2]
        wB0, wB1, wB2 = (w1[:, :, 0, 0].T, w1[:, :, 1, 0].T, w1[:, :, 2, 0].T)
        wB = jnp.concatenate([wB0, wB1, wB2], axis=1)             # [c0, 3c1]
        wC = w3[:, :, 0, 0].T                                     # [c1, c3]

        # Exact bias refactoring (so per-row bias adds vanish from the kernel):
        #   relu(a + b0)      == max(a, -b0) + b0
        #   relu(s + cs + b1) == max(s, -(cs+b1)) + (cs+b1),  cs = b0 @ sum_t wB_t
        #   y3                == y1' @ wC + ((cs+b1) @ wC + b3)
        cs = b0 @ (wB0 + wB1 + wB2)                               # [c1]
        thr0 = -b0
        thr1 = -(cs + b1)
        b3_eff = (cs + b1) @ wC + b3
        cmax = max(c0, c1, c2, c3)
        bias = jnp.zeros((4, cmax), jnp.float32)
        bias = (bias.at[0, :c0].set(thr0).at[1, :c1].set(thr1)
                    .at[2, :c2].set(b2).at[3, :c3].set(b3_eff))
        params.append({
            "packed": (jnp.asarray(wA, jnp.float32),
                       jnp.asarray(wB, jnp.float32),
                       jnp.asarray(wC, jnp.float32), bias),
            "raw": tuple(eff),     # only for the pure-JAX reference check
        })
    return params


# ----------------------------------------------------------------------------
# Pure-JAX reference for one scale's MLP (mirrors the PyTorch layer structure).
# ----------------------------------------------------------------------------
def msg_mlp_reference(g, raw):
    (w0, b0), (w1, b1), (w2, b2), (w3, b3) = raw
    hp = jax.lax.Precision.HIGHEST

    def conv_k(x, w, b):                 # x: [M, Kx, ci], w: [co, ci, kh, 1]
        kh = w.shape[2]
        kx = x.shape[1]
        out = 0.0
        for t in range(kh):
            out = out + jnp.einsum("mkc,oc->mko", x[:, t:kx - kh + 1 + t, :],
                                   w[:, :, t, 0], precision=hp)
        return out + b

    y = jax.nn.relu(conv_k(g, w0, b0))          # (2,1) conv
    y = jax.nn.relu(conv_k(y, w1, b1))          # (3,1) conv
    t = jax.nn.relu(conv_k(g, w2, b2))          # parallel 1x1 conv
    y = conv_k(y, w3, b3)                       # final 1x1 conv (no ReLU yet)
    cat = jnp.concatenate([t, y], axis=1)       # concat along the nsample axis
    return jnp.max(jax.nn.relu(cat), axis=1)    # [M, c_last]


# ----------------------------------------------------------------------------
# Forward pass (matches PointNetSetAbstractionMsg.forward)
# ----------------------------------------------------------------------------
def pointnet_sa_msg_forward(xyz, points, npoint, radius_list, nsample_list,
                            params_per_scale, mlp_fn=None):
    # xyz: [B, 3, N], points: [B, D, N]
    if mlp_fn is None:
        mlp_fn = lambda g, p: run_msg_mlp(g, p["packed"])
    xyz_t = jnp.transpose(xyz, (0, 2, 1))            # [B, N, 3]
    points_t = jnp.transpose(points, (0, 2, 1))      # [B, N, D]
    B, N, _ = xyz_t.shape
    S = npoint

    fps_idx = farthest_point_sample(xyz_t, S)        # [B, S]
    new_xyz = index_points(xyz_t, fps_idx)           # [B, S, 3]

    new_points_list = []
    for i, radius in enumerate(radius_list):
        K = nsample_list[i]
        group_idx = query_ball_point(radius, K, xyz_t, new_xyz)             # [B,S,K]
        grouped_xyz = index_points(xyz_t, group_idx) - new_xyz[:, :, None, :]
        grouped_pts = index_points(points_t, group_idx)                     # [B,S,K,D]
        g = jnp.concatenate([grouped_pts, grouped_xyz], axis=-1)            # [B,S,K,D+3]
        g = g.reshape(B * S, K, g.shape[-1]).astype(jnp.float32)

        new_pts = mlp_fn(g, params_per_scale[i])                            # [B*S, c_last]
        new_pts = new_pts.reshape(B, S, -1)
        new_points_list.append(jnp.transpose(new_pts, (0, 2, 1)))           # [B,c,S]

    new_xyz_out = jnp.transpose(new_xyz, (0, 2, 1))                         # [B, 3, S]
    new_points_concat = jnp.concatenate(new_points_list, axis=1)
    return new_xyz_out, new_points_concat


if __name__ == "__main__":
    key = jax.random.PRNGKey(0)
    B, N, D = 2, 32, 4
    npoint = 8
    radius_list = [0.4, 0.8]
    nsample_list = [8, 16]
    in_channel = D
    mlp_list = [[8, 16, 16, 16], [16, 32, 32, 32]]

    kx, kp, kw = jax.random.split(key, 3)
    xyz = jax.random.normal(kx, (B, 3, N), jnp.float32)
    points = jax.random.normal(kp, (B, D, N), jnp.float32)
    params = init_params(kw, in_channel, mlp_list)

    new_xyz, new_points = pointnet_sa_msg_forward(
        xyz, points, npoint, radius_list, nsample_list, params)
    new_xyz, new_points = jax.block_until_ready((new_xyz, new_points))

    assert new_xyz.shape == (B, 3, npoint)
    assert new_points.shape == (B, sum(m[-1] for m in mlp_list), npoint)
    assert bool(jnp.all(jnp.isfinite(new_points)))

    # Numerical self-check of the Pallas MLP (forced f32 compute so the
    # comparison against the pure-JAX PyTorch-structured reference is tight).
    kg = jax.random.PRNGKey(1)
    for si, K_chk in enumerate(nsample_list):
        g_chk = jax.random.normal(jax.random.fold_in(kg, si),
                                  (24, K_chk, in_channel + 3), jnp.float32)
        out_k = run_msg_mlp(g_chk, params[si]["packed"],
                            compute_dtype=jnp.float32)
        out_r = msg_mlp_reference(g_chk, params[si]["raw"])
        out_k, out_r = jax.block_until_ready((out_k, out_r))
        err = float(jnp.max(jnp.abs(out_k - out_r)))
        assert err < 2e-2, f"scale {si}: Pallas MLP mismatch (max abs err {err})"

    print("KERNEL_OK")
</pallas_src>

<mosaic_0001>
module attributes {stable_mosaic.version = 11 : i64} {
  func.func @_msg_mlp_kernel(%arg0: i32, %arg1: memref<128x7xf32, #tpu.memory_space<vmem>>, %arg2: memref<7x32xf32, #tpu.memory_space<vmem>>, %arg3: memref<8x48xf32, #tpu.memory_space<vmem>>, %arg4: memref<16x16xf32, #tpu.memory_space<vmem>>, %arg5: memref<4x16xf32, #tpu.memory_space<vmem>>, %arg6: memref<16x16xf32, #tpu.memory_space<vmem>>) attributes {dimension_semantics = [#tpu.dimension_semantics<parallel>], iteration_bounds = array<i64: 1>, scalar_prefetch = 0 : i64, scratch_operands = 0 : i64, tpu.core_type = #tpu.core_type<tc>, window_params = [{transform_indices = @transform_0, window_bounds = array<i64: 128, 7>}, {pipeline_mode = #tpu.pipeline_mode<synchronous>, transform_indices = @transform_1, window_bounds = array<i64: 7, 32>}, {pipeline_mode = #tpu.pipeline_mode<synchronous>, transform_indices = @transform_2, window_bounds = array<i64: 8, 48>}, {pipeline_mode = #tpu.pipeline_mode<synchronous>, transform_indices = @transform_3, window_bounds = array<i64: 16, 16>}, {pipeline_mode = #tpu.pipeline_mode<synchronous>, transform_indices = @transform_4, window_bounds = array<i64: 4, 16>}, {transform_indices = @transform_5, window_bounds = array<i64: 16, 16>}]} {
    %c0 = arith.constant 0 : index
    %c0_0 = arith.constant 0 : index
    %0 = vector.load %arg1[%c0, %c0_0] : memref<128x7xf32, #tpu.memory_space<vmem>>, vector<128x7xf32>
    %c0_1 = arith.constant 0 : index
    %c0_2 = arith.constant 0 : index
    %1 = vector.load %arg5[%c0_1, %c0_2] : memref<4x16xf32, #tpu.memory_space<vmem>>, vector<4x16xf32>
    %2 = vector.extract_strided_slice %1 {offsets = [0, 0], sizes = [1, 8], strides = [1, 1]} : vector<4x16xf32> to vector<1x8xf32>
    %3 = vector.extract_strided_slice %1 {offsets = [1, 0], sizes = [1, 16], strides = [1, 1]} : vector<4x16xf32> to vector<1x16xf32>
    %4 = vector.extract_strided_slice %1 {offsets = [2, 0], sizes = [1, 16], strides = [1, 1]} : vector<4x16xf32> to vector<1x16xf32>
    %5 = vector.extract_strided_slice %1 {offsets = [3, 0], sizes = [1, 16], strides = [1, 1]} : vector<4x16xf32> to vector<1x16xf32>
    %c0_3 = arith.constant 0 : index
    %c0_4 = arith.constant 0 : index
    %6 = vector.load %arg2[%c0_3, %c0_4] : memref<7x32xf32, #tpu.memory_space<vmem>>, vector<7x32xf32>
    %cst = arith.constant dense<0.000000e+00> : vector<128x32xf32>
    %7 = tpu.matmul %0, %6, %cst {dimension_numbers = #tpu.dot_dimension_numbers<[1], [0], [0], [1], [0, 0, 1, 1], [], []>} : vector<128x7xf32>, vector<7x32xf32>, vector<128x32xf32> -> vector<128x32xf32>
    %8 = vector.extract_strided_slice %7 {offsets = [0, 0], sizes = [128, 8], strides = [1, 1]} : vector<128x32xf32> to vector<128x8xf32>
    %9 = vector.extract_strided_slice %7 {offsets = [0, 8], sizes = [128, 8], strides = [1, 1]} : vector<128x32xf32> to vector<128x8xf32>
    %c127_i32 = arith.constant 127 : i32
    %10 = tpu.dynamic_rotate %9 by %c127_i32 dim 0 : vector<128x8xf32>, i32 -> vector<128x8xf32>
    %11 = arith.addf %8, %10 : vector<128x8xf32>
    %12 = vector.broadcast %2 : vector<1x8xf32> to vector<128x8xf32>
    %13 = arith.maximumf %11, %12 : vector<128x8xf32>
    %c0_5 = arith.constant 0 : index
    %c0_6 = arith.constant 0 : index
    %14 = vector.load %arg3[%c0_5, %c0_6] : memref<8x48xf32, #tpu.memory_space<vmem>>, vector<8x48xf32>
    %cst_7 = arith.constant dense<0.000000e+00> : vector<128x48xf32>
    %15 = tpu.matmul %13, %14, %cst_7 {dimension_numbers = #tpu.dot_dimension_numbers<[1], [0], [0], [1], [0, 0, 1, 1], [], []>} : vector<128x8xf32>, vector<8x48xf32>, vector<128x48xf32> -> vector<128x48xf32>
    %16 = vector.extract_strided_slice %15 {offsets = [0, 0], sizes = [128, 16], strides = [1, 1]} : vector<128x48xf32> to vector<128x16xf32>
    %17 = vector.extract_strided_slice %15 {offsets = [0, 16], sizes = [128, 16], strides = [1, 1]} : vector<128x48xf32> to vector<128x16xf32>
    %c127_i32_8 = arith.constant 127 : i32
    %18 = tpu.dynamic_rotate %17 by %c127_i32_8 dim 0 : vector<128x16xf32>, i32 -> vector<128x16xf32>
    %19 = arith.addf %16, %18 : vector<128x16xf32>
    %20 = vector.extract_strided_slice %15 {offsets = [0, 32], sizes = [128, 16], strides = [1, 1]} : vector<128x48xf32> to vector<128x16xf32>
    %c126_i32 = arith.constant 126 : i32
    %21 = tpu.dynamic_rotate %20 by %c126_i32 dim 0 : vector<128x16xf32>, i32 -> vector<128x16xf32>
    %22 = arith.addf %19, %21 : vector<128x16xf32>
    %23 = vector.broadcast %3 : vector<1x16xf32> to vector<128x16xf32>
    %24 = arith.maximumf %22, %23 : vector<128x16xf32>
    %c0_9 = arith.constant 0 : index
    %c0_10 = arith.constant 0 : index
    %25 = vector.load %arg4[%c0_9, %c0_10] : memref<16x16xf32, #tpu.memory_space<vmem>>, vector<16x16xf32>
    %cst_11 = arith.constant dense<0.000000e+00> : vector<128x16xf32>
    %26 = tpu.matmul %24, %25, %cst_11 {dimension_numbers = #tpu.dot_dimension_numbers<[1], [0], [0], [1], [0, 0, 1, 1], [], []>} : vector<128x16xf32>, vector<16x16xf32>, vector<128x16xf32> -> vector<128x16xf32>
    %27 = vector.extract_strided_slice %7 {offsets = [0, 16], sizes = [128, 16], strides = [1, 1]} : vector<128x32xf32> to vector<128x16xf32>
    %28 = vector.shape_cast %27 : vector<128x16xf32> to vector<16x8x16xf32>
    %cst_12 = arith.constant dense<0xFF800000> : vector<16x16xf32>
    %29 = vector.multi_reduction <maximumf>, %28, %cst_12 [1] : vector<16x8x16xf32> to vector<16x16xf32>
    %30 = vector.broadcast %4 : vector<1x16xf32> to vector<16x16xf32>
    %31 = arith.addf %29, %30 : vector<16x16xf32>
    %32 = vector.shape_cast %26 : vector<128x16xf32> to vector<16x8x16xf32>
    %33 = vector.extract_strided_slice %32 {offsets = [0, 0, 0], sizes = [16, 5, 16], strides = [1, 1, 1]} : vector<16x8x16xf32> to vector<16x5x16xf32>
    %cst_13 = arith.constant dense<0xFF800000> : vector<16x16xf32>
    %34 = vector.multi_reduction <maximumf>, %33, %cst_13 [1] : vector<16x5x16xf32> to vector<16x16xf32>
    %35 = vector.broadcast %5 : vector<1x16xf32> to vector<16x16xf32>
    %36 = arith.addf %34, %35 : vector<16x16xf32>
    %37 = arith.maximumf %31, %36 : vector<16x16xf32>
    %cst_14 = arith.constant 0.000000e+00 : f32
    %38 = vector.broadcast %cst_14 : f32 to vector<16x16xf32>
    %39 = arith.maximumf %37, %38 : vector<16x16xf32>
    %c0_15 = arith.constant 0 : index
    %c0_16 = arith.constant 0 : index
    %40 = vector.load %arg6[%c0_15, %c0_16] : memref<16x16xf32, #tpu.memory_space<vmem>>, vector<16x16xf32>
    tpu.vector_store %arg6[%c0_15, %c0_16], %39 {strides = array<i32>} : memref<16x16xf32, #tpu.memory_space<vmem>>, vector<16x16xf32>,
    return
  }
  func.func @transform_0(%arg0: i32) -> (i32, i32) {
    %c0_i32 = arith.constant 0 : i32
    %c0_i32_0 = arith.constant 0 : i32
    return %arg0, %c0_i32 : i32, i32
  }
  func.func @transform_1(%arg0: i32) -> (i32, i32) {
    %c0_i32 = arith.constant 0 : i32
    %c0_i32_0 = arith.constant 0 : i32
    %c0_i32_1 = arith.constant 0 : i32
    return %c0_i32, %c0_i32_0 : i32, i32
  }
  func.func @transform_2(%arg0: i32) -> (i32, i32) {
    %c0_i32 = arith.constant 0 : i32
    %c0_i32_0 = arith.constant 0 : i32
    %c0_i32_1 = arith.constant 0 : i32
    return %c0_i32, %c0_i32_0 : i32, i32
  }
  func.func @transform_3(%arg0: i32) -> (i32, i32) {
    %c0_i32 = arith.constant 0 : i32
    %c0_i32_0 = arith.constant 0 : i32
    %c0_i32_1 = arith.constant 0 : i32
    return %c0_i32, %c0_i32_0 : i32, i32
  }
  func.func @transform_4(%arg0: i32) -> (i32, i32) {
    %c0_i32 = arith.constant 0 : i32
    %c0_i32_0 = arith.constant 0 : i32
    %c0_i32_1 = arith.constant 0 : i32
    return %c0_i32, %c0_i32_0 : i32, i32
  }
  func.func @transform_5(%arg0: i32) -> (i32, i32) {
    %c0_i32 = arith.constant 0 : i32
    %c0_i32_0 = arith.constant 0 : i32
    return %arg0, %c0_i32 : i32, i32
  }
}

</mosaic_0001>

<llo_original>
// kernel: tpu_custom_call.1
$region0: #{tpu_custom_call.1}
  #allocation0 [shape = 'u32[]', space=smem, size = 0x4, offset = 0x4, fixed_abs, tag = 'smem constant byte address 0x4 - core index']
  #allocation1 [shape = 'u32[72,128]{1,0:T(1,128)}', space=vmem, size = 0x9000, scoped, tag = 'internal scratch']
  %s0 = inlined_call_operand.vmem [shape: f32[128,7], index: 0, kind: input, shape index: {}]
  %s1 = inlined_call_operand.vmem [shape: f32[7,32], index: 1, kind: input, shape index: {}]
  %s2 = inlined_call_operand.vmem [shape: f32[8,48], index: 2, kind: input, shape index: {}]
  %s3 = inlined_call_operand.vmem [shape: f32[16,16], index: 3, kind: input, shape index: {}]
  %s4 = inlined_call_operand.vmem [shape: f32[4,16], index: 4, kind: input, shape index: {}]
  %s5 = inlined_call_operand.hbm [shape: f32[16,16], index: 5, kind: output, shape index: {}]
  %s6 = sld [smem:[#allocation0]]
  $region30: #{tpu_custom_call.1} parent=0
    _
  %s8 = ssub.s32 1, %s6
  %s9 = scalar_select 0, %s8, %s6
  $region1: #{tpu_custom_call.1} parent=0
    #allocation2 [shape = 'u8[8192]{0}', space=vmem, size = 0x2000, scoped, tag = 'output window, operand 0, single buffered']
    #allocation3 [shape = 's32[1]{0}', space=sflag, size = 0x4, scoped, tag = 'scoped memory for tpu_custom_call.1']
    %10 = vsyncpa [#allocation3], 0
    // Predicated region
    $region2: #{tpu_custom_call.1} parent=1 // pred_check
      _
    $region3: #{tpu_custom_call.1} parent=1 // pred_check_branch
      %12 = sbr.rel (0) target = $region5
    $region4: #{tpu_custom_call.1} parent=1 // pred_region
      _
    $region5: #{tpu_custom_call.1} parent=1 // pred_fallthru
      _
    // Predicated region
    $region6: #{tpu_custom_call.1} parent=1 // pred_check
      _
    $region7: #{tpu_custom_call.1} parent=1 // pred_check_branch
      %14 = sbr.rel (0) target = $region9
    $region8: #{tpu_custom_call.1} parent=1 // pred_region
      _
    $region9: #{tpu_custom_call.1} parent=1 // pred_fallthru
      _
    // Predicated region
    $region10: #{tpu_custom_call.1} parent=1 // pred_check
      _
    $region11: #{tpu_custom_call.1} parent=1 // pred_check_branch
      %16 = sbr.rel (0) target = $region13
    $region12: #{tpu_custom_call.1} parent=1 // pred_region
      _
    $region13: #{tpu_custom_call.1} parent=1 // pred_fallthru
      _
    // Predicated region
    $region14: #{tpu_custom_call.1} parent=1 // pred_check
      _
    $region15: #{tpu_custom_call.1} parent=1 // pred_check_branch
      %18 = sbr.rel (0) target = $region17
    $region16: #{tpu_custom_call.1} parent=1 // pred_region
      _
    $region17: #{tpu_custom_call.1} parent=1 // pred_fallthru
      _
    // Predicated region
    $region18: #{tpu_custom_call.1} parent=1 // pred_check
      _
    $region19: #{tpu_custom_call.1} parent=1 // pred_check_branch
      %20 = sbr.rel (0) target = $region21
    $region20: #{tpu_custom_call.1} parent=1 // pred_region
      _
    $region21: #{tpu_custom_call.1} parent=1 // pred_fallthru
      _
    %v21 = vld [vmem:[%s0] sm:$0xff]
    %v22 = vld [vmem:[%s0 + $0x8] sm:$0xff]
    %v23 = vld [vmem:[%s0 + $0x10] sm:$0xff]
    %v24 = vld [vmem:[%s0 + $0x18] sm:$0xff]
    %v25 = vld [vmem:[%s0 + $0x20] sm:$0xff]
    %v26 = vld [vmem:[%s0 + $0x28] sm:$0xff]
    %v27 = vld [vmem:[%s0 + $0x30] sm:$0xff]
    %v28 = vld [vmem:[%s0 + $0x38] sm:$0xff]
    %v29 = vld [vmem:[%s0 + $0x40] sm:$0xff]
    %v30 = vld [vmem:[%s0 + $0x48] sm:$0xff]
    %v31 = vld [vmem:[%s0 + $0x50] sm:$0xff]
    %v32 = vld [vmem:[%s0 + $0x58] sm:$0xff]
    %v33 = vld [vmem:[%s0 + $0x60] sm:$0xff]
    %v34 = vld [vmem:[%s0 + $0x68] sm:$0xff]
    %v35 = vld [vmem:[%s0 + $0x70] sm:$0xff]
    %v36 = vld [vmem:[%s0 + $0x78] sm:$0xff]
    %v37 = vld [vmem:[%s4] sm:$0xf]
    %v38 = vld [vmem:[%s1] sm:$0x7f]
    %vm39 = vcmask 56320
    %v41 = vsel %vm39, %v21, 0
    %v44 = vsel %vm39, %v22, 0
    %v47 = vsel %vm39, %v23, 0
    %v50 = vsel %vm39, %v24, 0
    %v53 = vsel %vm39, %v25, 0
    %v56 = vsel %vm39, %v26, 0
    %v59 = vsel %vm39, %v27, 0
    %v62 = vsel %vm39, %v28, 0
    %v65 = vsel %vm39, %v29, 0
    %v68 = vsel %vm39, %v30, 0
    %v71 = vsel %vm39, %v31, 0
    %v74 = vsel %vm39, %v32, 0
    %v77 = vsel %vm39, %v33, 0
    %v80 = vsel %vm39, %v34, 0
    %v83 = vsel %vm39, %v35, 0
    %v86 = vsel %vm39, %v36, 0
    %vm88 = vcmask 1046528
    %v90 = vsel %vm88, %v38, 0
    %92 = vmatpush.msra.mxu0 0.0
    %93 = vmatpush.msra.mxu0 0.0
    %94 = vmatpush.msra.mxu0 0.0
    %95 = vmatpush.msra.mxu0 0.0
    %96 = vmatpush.msra.mxu0 0.0
    %97 = vmatpush.msra.mxu0 0.0
    %98 = vmatpush.msra.mxu0 0.0
    %99 = vmatpush.msra.mxu0 0.0
    %100 = vmatpush.msra.mxu0 0.0
    %101 = vmatpush.msra.mxu0 0.0
    %102 = vmatpush.msra.mxu0 0.0
    %103 = vmatpush.msra.mxu0 0.0
    %104 = vmatpush.msra.mxu0 0.0
    %105 = vmatpush.msra.mxu0 0.0
    %106 = vmatpush.msra.mxu0 0.0
    %107 = vmatpush.msra.mxu0 %v90
    %108 = vmatmul.f32.gmra.mxu0 %v41
    %v109 = vpop.f32.mrf.mxu0
    %v110 = vadd.f32 0.0, %v109
    %111 = vmatmul.f32.gmra.mxu0 %v44
    %v112 = vpop.f32.mrf.mxu0
    %v113 = vadd.f32 0.0, %v112
    %114 = vmatmul.f32.gmra.mxu0 %v47
    %v115 = vpop.f32.mrf.mxu0
    %v116 = vadd.f32 0.0, %v115
    %117 = vmatmul.f32.gmra.mxu0 %v50
    %v118 = vpop.f32.mrf.mxu0
    %v119 = vadd.f32 0.0, %v118
    %120 = vmatmul.f32.gmra.mxu0 %v53
    %v121 = vpop.f32.mrf.mxu0
    %v122 = vadd.f32 0.0, %v121
    %123 = vmatmul.f32.gmra.mxu0 %v56
    %v124 = vpop.f32.mrf.mxu0
    %v125 = vadd.f32 0.0, %v124
    %126 = vmatmul.f32.gmra.mxu0 %v59
    %v127 = vpop.f32.mrf.mxu0
    %v128 = vadd.f32 0.0, %v127
    %129 = vmatmul.f32.gmra.mxu0 %v62
    %v130 = vpop.f32.mrf.mxu0
    %v131 = vadd.f32 0.0, %v130
    %132 = vmatmul.f32.gmra.mxu0 %v65
    %v133 = vpop.f32.mrf.mxu0
    %v134 = vadd.f32 0.0, %v133
    %135 = vmatmul.f32.gmra.mxu0 %v68
    %v136 = vpop.f32.mrf.mxu0
    %v137 = vadd.f32 0.0, %v136
    %138 = vmatmul.f32.gmra.mxu0 %v71
    %v139 = vpop.f32.mrf.mxu0
    %v140 = vadd.f32 0.0, %v139
    %141 = vmatmul.f32.gmra.mxu0 %v74
    %v142 = vpop.f32.mrf.mxu0
    %v143 = vadd.f32 0.0, %v142
    %144 = vmatmul.f32.gmra.mxu0 %v77
    %v145 = vpop.f32.mrf.mxu0
    %v146 = vadd.f32 0.0, %v145
    %147 = vmatmul.f32.gmra.mxu0 %v80
    %v148 = vpop.f32.mrf.mxu0
    %v149 = vadd.f32 0.0, %v148
    %150 = vmatmul.f32.gmra.mxu0 %v83
    %v151 = vpop.f32.mrf.mxu0
    %v152 = vadd.f32 0.0, %v151
    %153 = vmatmul.f32.gmra.mxu0 %v86
    %v154 = vpop.f32.mrf.mxu0
    %v155 = vadd.f32 0.0, %v154
    %156 = vdwg.mxu0
    %173 = vrot.lane.b32.xlu0 %v110, 120
    %v174 = vpop.permute.xlu0 %173
    %175 = vrot.lane.b32.xlu0 %v113, 120
    %v176 = vpop.permute.xlu0 %175
    %177 = vrot.lane.b32.xlu0 %v116, 120
    %v178 = vpop.permute.xlu0 %177
    %179 = vrot.lane.b32.xlu0 %v119, 120
    %v180 = vpop.permute.xlu0 %179
    %181 = vrot.lane.b32.xlu0 %v122, 120
    %v182 = vpop.permute.xlu0 %181
    %183 = vrot.lane.b32.xlu0 %v125, 120
    %v184 = vpop.permute.xlu0 %183
    %185 = vrot.lane.b32.xlu0 %v128, 120
    %v186 = vpop.permute.xlu0 %185
    %187 = vrot.lane.b32.xlu0 %v131, 120
    %v188 = vpop.permute.xlu0 %187
    %189 = vrot.lane.b32.xlu0 %v134, 120
    %v190 = vpop.permute.xlu0 %189
    %191 = vrot.lane.b32.xlu0 %v137, 120
    %v192 = vpop.permute.xlu0 %191
    %193 = vrot.lane.b32.xlu0 %v140, 120
    %v194 = vpop.permute.xlu0 %193
    %195 = vrot.lane.b32.xlu0 %v143, 120
    %v196 = vpop.permute.xlu0 %195
    %197 = vrot.lane.b32.xlu0 %v146, 120
    %v198 = vpop.permute.xlu0 %197
    %199 = vrot.lane.b32.xlu0 %v149, 120
    %v200 = vpop.permute.xlu0 %199
    %201 = vrot.lane.b32.xlu0 %v152, 120
    %v202 = vpop.permute.xlu0 %201
    %203 = vrot.lane.b32.xlu0 %v155, 120
    %v204 = vpop.permute.xlu0 %203
    %v221 = vrot.slane %v174, 1
    %v222 = vrot.slane %v176, 1
    %v223 = vrot.slane %v178, 1
    %v224 = vrot.slane %v180, 1
    %v225 = vrot.slane %v182, 1
    %v226 = vrot.slane %v184, 1
    %v227 = vrot.slane %v186, 1
    %v228 = vrot.slane %v188, 1
    %v229 = vrot.slane %v190, 1
    %v230 = vrot.slane %v192, 1
    %v231 = vrot.slane %v194, 1
    %v232 = vrot.slane %v196, 1
    %v233 = vrot.slane %v198, 1
    %v234 = vrot.slane %v200, 1
    %v235 = vrot.slane %v202, 1
    %v236 = vrot.slane %v204, 1
    %v237 = vlaneseq
    %v238 = vshrl.u32 %v237, 7
    %vm239 = vcmp.lt.s32.totalorder %v238, 7
    %v240 = vsel %vm239, %v235, %v236
    %v241 = vsel %vm239, %v234, %v235
    %v242 = vsel %vm239, %v233, %v234
    %v243 = vsel %vm239, %v232, %v233
    %v244 = vsel %vm239, %v231, %v232
    %v245 = vsel %vm239, %v230, %v231
    %v246 = vsel %vm239, %v229, %v230
    %v247 = vsel %vm239, %v228, %v229
    %v248 = vsel %vm239, %v227, %v228
    %v249 = vsel %vm239, %v226, %v227
    %v250 = vsel %vm239, %v225, %v226
    %v251 = vsel %vm239, %v224, %v225
    %v252 = vsel %vm239, %v223, %v224
    %v253 = vsel %vm239, %v222, %v223
    %v254 = vsel %vm239, %v221, %v222
    %v255 = vsel %vm239, %v236, %v221
    %v256 = vadd.f32 %v110, %v254
    %v257 = vadd.f32 %v113, %v253
    %v258 = vadd.f32 %v116, %v252
    %v259 = vadd.f32 %v119, %v251
    %v260 = vadd.f32 %v122, %v250
    %v261 = vadd.f32 %v125, %v249
    %v262 = vadd.f32 %v128, %v248
    %v263 = vadd.f32 %v131, %v247
    %v264 = vadd.f32 %v134, %v246
    %v265 = vadd.f32 %v137, %v245
    %v266 = vadd.f32 %v140, %v244
    %v267 = vadd.f32 %v143, %v243
    %v268 = vadd.f32 %v146, %v242
    %v269 = vadd.f32 %v149, %v241
    %v270 = vadd.f32 %v152, %v240
    %v271 = vadd.f32 %v155, %v255
    %v272 = vperm.slane %v37, 0
    %v273 = vmax.f32 %v256, %v272
    %v274 = vmax.f32 %v257, %v272
    %v275 = vmax.f32 %v258, %v272
    %v276 = vmax.f32 %v259, %v272
    %v277 = vmax.f32 %v260, %v272
    %v278 = vmax.f32 %v261, %v272
    %v279 = vmax.f32 %v262, %v272
    %v280 = vmax.f32 %v263, %v272
    %v281 = vmax.f32 %v264, %v272
    %v282 = vmax.f32 %v265, %v272
    %v283 = vmax.f32 %v266, %v272
    %v284 = vmax.f32 %v267, %v272
    %v285 = vmax.f32 %v268, %v272
    %v286 = vmax.f32 %v269, %v272
    %v287 = vmax.f32 %v270, %v272
    %v288 = vmax.f32 %v271, %v272
    %v289 = vld [vmem:[%s2] sm:$0xff]
    %vm290 = vcmask 64512
    %v292 = vsel %vm290, %v273, 0
    %v295 = vsel %vm290, %v274, 0
    %v298 = vsel %vm290, %v275, 0
    %v301 = vsel %vm290, %v276, 0
    %v304 = vsel %vm290, %v277, 0
    %v307 = vsel %vm290, %v278, 0
    %v310 = vsel %vm290, %v279, 0
    %v313 = vsel %vm290, %v280, 0
    %v316 = vsel %vm290, %v281, 0
    %v319 = vsel %vm290, %v282, 0
    %v322 = vsel %vm290, %v283, 0
    %v325 = vsel %vm290, %v284, 0
    %v328 = vsel %vm290, %v285, 0
    %v331 = vsel %vm290, %v286, 0
    %v334 = vsel %vm290, %v287, 0
    %v337 = vsel %vm290, %v288, 0
    %339 = vmatpush.msra.mxu0 0.0
    %340 = vmatpush.msra.mxu0 0.0
    %341 = vmatpush.msra.mxu0 0.0
    %342 = vmatpush.msra.mxu0 0.0
    %343 = vmatpush.msra.mxu0 0.0
    %344 = vmatpush.msra.mxu0 0.0
    %345 = vmatpush.msra.mxu0 0.0
    %346 = vmatpush.msra.mxu0 0.0
    %347 = vmatpush.msra.mxu0 0.0
    %348 = vmatpush.msra.mxu0 0.0
    %349 = vmatpush.msra.mxu0 0.0
    %350 = vmatpush.msra.mxu0 0.0
    %351 = vmatpush.msra.mxu0 0.0
    %352 = vmatpush.msra.mxu0 0.0
    %353 = vmatpush.msra.mxu0 0.0
    %354 = vmatpush.msra.mxu0 %v289
    %355 = vmatmul.f32.gmra.mxu0 %v292
    %v356 = vpop.f32.mrf.mxu0
    %v357 = vadd.f32 0.0, %v356
    %358 = vmatmul.f32.gmra.mxu0 %v295
    %v359 = vpop.f32.mrf.mxu0
    %v360 = vadd.f32 0.0, %v359
    %361 = vmatmul.f32.gmra.mxu0 %v298
    %v362 = vpop.f32.mrf.mxu0
    %v363 = vadd.f32 0.0, %v362
    %364 = vmatmul.f32.gmra.mxu0 %v301
    %v365 = vpop.f32.mrf.mxu0
    %v366 = vadd.f32 0.0, %v365
    %367 = vmatmul.f32.gmra.mxu0 %v304
    %v368 = vpop.f32.mrf.mxu0
    %v369 = vadd.f32 0.0, %v368
    %370 = vmatmul.f32.gmra.mxu0 %v307
    %v371 = vpop.f32.mrf.mxu0
    %v372 = vadd.f32 0.0, %v371
    %373 = vmatmul.f32.gmra.mxu0 %v310
    %v374 = vpop.f32.mrf.mxu0
    %v375 = vadd.f32 0.0, %v374
    %376 = vmatmul.f32.gmra.mxu0 %v313
    %v377 = vpop.f32.mrf.mxu0
    %v378 = vadd.f32 0.0, %v377
    %379 = vmatmul.f32.gmra.mxu0 %v316
    %v380 = vpop.f32.mrf.mxu0
    %v381 = vadd.f32 0.0, %v380
    %382 = vmatmul.f32.gmra.mxu0 %v319
    %v383 = vpop.f32.mrf.mxu0
    %v384 = vadd.f32 0.0, %v383
    %385 = vmatmul.f32.gmra.mxu0 %v322
    %v386 = vpop.f32.mrf.mxu0
    %v387 = vadd.f32 0.0, %v386
    %388 = vmatmul.f32.gmra.mxu0 %v325
    %v389 = vpop.f32.mrf.mxu0
    %v390 = vadd.f32 0.0, %v389
    %391 = vmatmul.f32.gmra.mxu0 %v328
    %v392 = vpop.f32.mrf.mxu0
    %v393 = vadd.f32 0.0, %v392
    %394 = vmatmul.f32.gmra.mxu0 %v331
    %v395 = vpop.f32.mrf.mxu0
    %v396 = vadd.f32 0.0, %v395
    %397 = vmatmul.f32.gmra.mxu0 %v334
    %v398 = vpop.f32.mrf.mxu0
    %v399 = vadd.f32 0.0, %v398
    %400 = vmatmul.f32.gmra.mxu0 %v337
    %v401 = vpop.f32.mrf.mxu0
    %v402 = vadd.f32 0.0, %v401
    %403 = vdwg.mxu0
    %420 = vrot.lane.b32.xlu0 %v357, 112
    %v421 = vpop.permute.xlu0 %420
    %422 = vrot.lane.b32.xlu0 %v360, 112
    %v423 = vpop.permute.xlu0 %422
    %424 = vrot.lane.b32.xlu0 %v363, 112
    %v425 = vpop.permute.xlu0 %424
    %426 = vrot.lane.b32.xlu0 %v366, 112
    %v427 = vpop.permute.xlu0 %426
    %428 = vrot.lane.b32.xlu0 %v369, 112
    %v429 = vpop.permute.xlu0 %428
    %430 = vrot.lane.b32.xlu0 %v372, 112
    %v431 = vpop.permute.xlu0 %430
    %432 = vrot.lane.b32.xlu0 %v375, 112
    %v433 = vpop.permute.xlu0 %432
    %434 = vrot.lane.b32.xlu0 %v378, 112
    %v435 = vpop.permute.xlu0 %434
    %436 = vrot.lane.b32.xlu0 %v381, 112
    %v437 = vpop.permute.xlu0 %436
    %438 = vrot.lane.b32.xlu0 %v384, 112
    %v439 = vpop.permute.xlu0 %438
    %440 = vrot.lane.b32.xlu0 %v387, 112
    %v441 = vpop.permute.xlu0 %440
    %442 = vrot.lane.b32.xlu0 %v390, 112
    %v443 = vpop.permute.xlu0 %442
    %444 = vrot.lane.b32.xlu0 %v393, 112
    %v445 = vpop.permute.xlu0 %444
    %446 = vrot.lane.b32.xlu0 %v396, 112
    %v447 = vpop.permute.xlu0 %446
    %448 = vrot.lane.b32.xlu0 %v399, 112
    %v449 = vpop.permute.xlu0 %448
    %450 = vrot.lane.b32.xlu0 %v402, 112
    %v451 = vpop.permute.xlu0 %450
    %v468 = vrot.slane %v421, 1
    %v469 = vrot.slane %v423, 1
    %v470 = vrot.slane %v425, 1
    %v471 = vrot.slane %v427, 1
    %v472 = vrot.slane %v429, 1
    %v473 = vrot.slane %v431, 1
    %v474 = vrot.slane %v433, 1
    %v475 = vrot.slane %v435, 1
    %v476 = vrot.slane %v437, 1
    %v477 = vrot.slane %v439, 1
    %v478 = vrot.slane %v441, 1
    %v479 = vrot.slane %v443, 1
    %v480 = vrot.slane %v445, 1
    %v481 = vrot.slane %v447, 1
    %v482 = vrot.slane %v449, 1
    %v483 = vrot.slane %v451, 1
    %v484 = vsel %vm239, %v482, %v483
    %v485 = vsel %vm239, %v481, %v482
    %v486 = vsel %vm239, %v480, %v481
    %v487 = vsel %vm239, %v479, %v480
    %v488 = vsel %vm239, %v478, %v479
    %v489 = vsel %vm239, %v477, %v478
    %v490 = vsel %vm239, %v476, %v477
    %v491 = vsel %vm239, %v475, %v476
    %v492 = vsel %vm239, %v474, %v475
    %v493 = vsel %vm239, %v473, %v474
    %v494 = vsel %vm239, %v472, %v473
    %v495 = vsel %vm239, %v471, %v472
    %v496 = vsel %vm239, %v470, %v471
    %v497 = vsel %vm239, %v469, %v470
    %v498 = vsel %vm239, %v468, %v469
    %v499 = vsel %vm239, %v483, %v468
    %v500 = vadd.f32 %v357, %v498
    %v501 = vadd.f32 %v360, %v497
    %v502 = vadd.f32 %v363, %v496
    %v503 = vadd.f32 %v366, %v495
    %v504 = vadd.f32 %v369, %v494
    %v505 = vadd.f32 %v372, %v493
    %v506 = vadd.f32 %v375, %v492
    %v507 = vadd.f32 %v378, %v491
    %v508 = vadd.f32 %v381, %v490
    %v509 = vadd.f32 %v384, %v489
    %v510 = vadd.f32 %v387, %v488
    %v511 = vadd.f32 %v390, %v487
    %v512 = vadd.f32 %v393, %v486
    %v513 = vadd.f32 %v396, %v485
    %v514 = vadd.f32 %v399, %v484
    %v515 = vadd.f32 %v402, %v499
    %516 = vrot.lane.b32.xlu0 %v357, 96
    %v517 = vpop.permute.xlu0 %516
    %518 = vrot.lane.b32.xlu0 %v360, 96
    %v519 = vpop.permute.xlu0 %518
    %520 = vrot.lane.b32.xlu0 %v363, 96
    %v521 = vpop.permute.xlu0 %520
    %522 = vrot.lane.b32.xlu0 %v366, 96
    %v523 = vpop.permute.xlu0 %522
    %524 = vrot.lane.b32.xlu0 %v369, 96
    %v525 = vpop.permute.xlu0 %524
    %526 = vrot.lane.b32.xlu0 %v372, 96
    %v527 = vpop.permute.xlu0 %526
    %528 = vrot.lane.b32.xlu0 %v375, 96
    %v529 = vpop.permute.xlu0 %528
    %530 = vrot.lane.b32.xlu0 %v378, 96
    %v531 = vpop.permute.xlu0 %530
    %532 = vrot.lane.b32.xlu0 %v381, 96
    %v533 = vpop.permute.xlu0 %532
    %534 = vrot.lane.b32.xlu0 %v384, 96
    %v535 = vpop.permute.xlu0 %534
    %536 = vrot.lane.b32.xlu0 %v387, 96
    %v537 = vpop.permute.xlu0 %536
    %538 = vrot.lane.b32.xlu0 %v390, 96
    %v539 = vpop.permute.xlu0 %538
    %540 = vrot.lane.b32.xlu0 %v393, 96
    %v541 = vpop.permute.xlu0 %540
    %542 = vrot.lane.b32.xlu0 %v396, 96
    %v543 = vpop.permute.xlu0 %542
    %544 = vrot.lane.b32.xlu0 %v399, 96
    %v545 = vpop.permute.xlu0 %544
    %546 = vrot.lane.b32.xlu0 %v402, 96
    %v547 = vpop.permute.xlu0 %546
    %v564 = vrot.slane %v517, 2
    %v565 = vrot.slane %v519, 2
    %v566 = vrot.slane %v521, 2
    %v567 = vrot.slane %v523, 2
    %v568 = vrot.slane %v525, 2
    %v569 = vrot.slane %v527, 2
    %v570 = vrot.slane %v529, 2
    %v571 = vrot.slane %v531, 2
    %v572 = vrot.slane %v533, 2
    %v573 = vrot.slane %v535, 2
    %v574 = vrot.slane %v537, 2
    %v575 = vrot.slane %v539, 2
    %v576 = vrot.slane %v541, 2
    %v577 = vrot.slane %v543, 2
    %v578 = vrot.slane %v545, 2
    %v579 = vrot.slane %v547, 2
    %vm580 = vcmp.lt.s32.totalorder %v238, 6
    %v581 = vsel %vm580, %v578, %v579
    %v582 = vsel %vm580, %v577, %v578
    %v583 = vsel %vm580, %v576, %v577
    %v584 = vsel %vm580, %v575, %v576
    %v585 = vsel %vm580, %v574, %v575
    %v586 = vsel %vm580, %v573, %v574
    %v587 = vsel %vm580, %v572, %v573
    %v588 = vsel %vm580, %v571, %v572
    %v589 = vsel %vm580, %v570, %v571
    %v590 = vsel %vm580, %v569, %v570
    %v591 = vsel %vm580, %v568, %v569
    %v592 = vsel %vm580, %v567, %v568
    %v593 = vsel %vm580, %v566, %v567
    %v594 = vsel %vm580, %v565, %v566
    %v595 = vsel %vm580, %v564, %v565
    %v596 = vsel %vm580, %v579, %v564
    %v597 = vadd.f32 %v500, %v595
    %v598 = vadd.f32 %v501, %v594
    %v599 = vadd.f32 %v502, %v593
    %v600 = vadd.f32 %v503, %v592
    %v601 = vadd.f32 %v504, %v591
    %v602 = vadd.f32 %v505, %v590
    %v603 = vadd.f32 %v506, %v589
    %v604 = vadd.f32 %v507, %v588
    %v605 = vadd.f32 %v508, %v587
    %v606 = vadd.f32 %v509, %v586
    %v607 = vadd.f32 %v510, %v585
    %v608 = vadd.f32 %v511, %v584
    %v609 = vadd.f32 %v512, %v583
    %v610 = vadd.f32 %v513, %v582
    %v611 = vadd.f32 %v514, %v581
    %v612 = vadd.f32 %v515, %v596
    %v613 = vperm.slane %v37, 1
    %v614 = vmax.f32 %v597, %v613
    %v615 = vmax.f32 %v598, %v613
    %v616 = vmax.f32 %v599, %v613
    %v617 = vmax.f32 %v600, %v613
    %v618 = vmax.f32 %v601, %v613
    %v619 = vmax.f32 %v602, %v613
    %v620 = vmax.f32 %v603, %v613
    %v621 = vmax.f32 %v604, %v613
    %v622 = vmax.f32 %v605, %v613
    %v623 = vmax.f32 %v606, %v613
    %v624 = vmax.f32 %v607, %v613
    %v625 = vmax.f32 %v608, %v613
    %v626 = vmax.f32 %v609, %v613
    %v627 = vmax.f32 %v610, %v613
    %v628 = vmax.f32 %v611, %v613
    %v629 = vmax.f32 %v612, %v613
    %v630 = vld [vmem:[%s3] sm:$0xff]
    %v631 = vld [vmem:[%s3 + $0x8] sm:$0xff]
    %vm632 = vcmask 130048
    %v634 = vsel %vm632, %v614, 0
    %v637 = vsel %vm632, %v615, 0
    %v640 = vsel %vm632, %v616, 0
    %v643 = vsel %vm632, %v617, 0
    %v646 = vsel %vm632, %v618, 0
    %v649 = vsel %vm632, %v619, 0
    %v652 = vsel %vm632, %v620, 0
    %v655 = vsel %vm632, %v621, 0
    %v658 = vsel %vm632, %v622, 0
    %v661 = vsel %vm632, %v623, 0
    %v664 = vsel %vm632, %v624, 0
    %v667 = vsel %vm632, %v625, 0
    %v670 = vsel %vm632, %v626, 0
    %v673 = vsel %vm632, %v627, 0
    %v676 = vsel %vm632, %v628, 0
    %v679 = vsel %vm632, %v629, 0
    %681 = vmatpush.msra.mxu0 0.0
    %682 = vmatpush.msra.mxu0 0.0
    %683 = vmatpush.msra.mxu0 0.0
    %684 = vmatpush.msra.mxu0 0.0
    %685 = vmatpush.msra.mxu0 0.0
    %686 = vmatpush.msra.mxu0 0.0
    %687 = vmatpush.msra.mxu0 0.0
    %688 = vmatpush.msra.mxu0 0.0
    %689 = vmatpush.msra.mxu0 0.0
    %690 = vmatpush.msra.mxu0 0.0
    %691 = vmatpush.msra.mxu0 0.0
    %692 = vmatpush.msra.mxu0 0.0
    %693 = vmatpush.msra.mxu0 0.0
    %694 = vmatpush.msra.mxu0 0.0
    %695 = vmatpush.msra.mxu0 %v631
    %696 = vmatpush.msra.mxu0 %v630
    %697 = vmatmul.f32.gmra.mxu0 %v634
    %v698 = vpop.f32.mrf.mxu0
    %v699 = vadd.f32 0.0, %v698
    %700 = vmatmul.f32.gmra.mxu0 %v637
    %v701 = vpop.f32.mrf.mxu0
    %v702 = vadd.f32 0.0, %v701
    %703 = vmatmul.f32.gmra.mxu0 %v640
    %v704 = vpop.f32.mrf.mxu0
    %v705 = vadd.f32 0.0, %v704
    %706 = vmatmul.f32.gmra.mxu0 %v643
    %v707 = vpop.f32.mrf.mxu0
    %v708 = vadd.f32 0.0, %v707
    %709 = vmatmul.f32.gmra.mxu0 %v646
    %v710 = vpop.f32.mrf.mxu0
    %v711 = vadd.f32 0.0, %v710
    %712 = vmatmul.f32.gmra.mxu0 %v649
    %v713 = vpop.f32.mrf.mxu0
    %v714 = vadd.f32 0.0, %v713
    %715 = vmatmul.f32.gmra.mxu0 %v652
    %v716 = vpop.f32.mrf.mxu0
    %v717 = vadd.f32 0.0, %v716
    %718 = vmatmul.f32.gmra.mxu0 %v655
    %v719 = vpop.f32.mrf.mxu0
    %v720 = vadd.f32 0.0, %v719
    %721 = vmatmul.f32.gmra.mxu0 %v658
    %v722 = vpop.f32.mrf.mxu0
    %v723 = vadd.f32 0.0, %v722
    %724 = vmatmul.f32.gmra.mxu0 %v661
    %v725 = vpop.f32.mrf.mxu0
    %v726 = vadd.f32 0.0, %v725
    %727 = vmatmul.f32.gmra.mxu0 %v664
    %v728 = vpop.f32.mrf.mxu0
    %v729 = vadd.f32 0.0, %v728
    %730 = vmatmul.f32.gmra.mxu0 %v667
    %v731 = vpop.f32.mrf.mxu0
    %v732 = vadd.f32 0.0, %v731
    %733 = vmatmul.f32.gmra.mxu0 %v670
    %v734 = vpop.f32.mrf.mxu0
    %v735 = vadd.f32 0.0, %v734
    %736 = vmatmul.f32.gmra.mxu0 %v673
    %v737 = vpop.f32.mrf.mxu0
    %v738 = vadd.f32 0.0, %v737
    %739 = vmatmul.f32.gmra.mxu0 %v676
    %v740 = vpop.f32.mrf.mxu0
    %v741 = vadd.f32 0.0, %v740
    %742 = vmatmul.f32.gmra.mxu0 %v679
    %v743 = vpop.f32.mrf.mxu0
    %v744 = vadd.f32 0.0, %v743
    %745 = vdwg.mxu0
    %vm746 = vcmask 261248
    %v747 = vsel %vm746, %v110, -inf
    %v748 = vrot.slane %v747, 4
    %v749 = vmax.f32 %v747, %v748
    %v750 = vrot.slane %v749, 2
    %v751 = vmax.f32 %v749, %v750
    %v752 = vrot.slane %v751, 1
    %v753 = vmax.f32 %v751, %v752
    %v754 = vsel %vm746, %v113, -inf
    %v755 = vrot.slane %v754, 4
    %v756 = vmax.f32 %v754, %v755
    %v757 = vrot.slane %v756, 2
    %v758 = vmax.f32 %v756, %v757
    %v759 = vrot.slane %v758, 1
    %v760 = vmax.f32 %v758, %v759
    %v761 = vsel %vm746, %v116, -inf
    %v762 = vrot.slane %v761, 4
    %v763 = vmax.f32 %v761, %v762
    %v764 = vrot.slane %v763, 2
    %v765 = vmax.f32 %v763, %v764
    %v766 = vrot.slane %v765, 1
    %v767 = vmax.f32 %v765, %v766
    %v768 = vsel %vm746, %v119, -inf
    %v769 = vrot.slane %v768, 4
    %v770 = vmax.f32 %v768, %v769
    %v771 = vrot.slane %v770, 2
    %v772 = vmax.f32 %v770, %v771
    %v773 = vrot.slane %v772, 1
    %v774 = vmax.f32 %v772, %v773
    %v775 = vsel %vm746, %v122, -inf
    %v776 = vrot.slane %v775, 4
    %v777 = vmax.f32 %v775, %v776
    %v778 = vrot.slane %v777, 2
    %v779 = vmax.f32 %v777, %v778
    %v780 = vrot.slane %v779, 1
    %v781 = vmax.f32 %v779, %v780
    %v782 = vsel %vm746, %v125, -inf
    %v783 = vrot.slane %v782, 4
    %v784 = vmax.f32 %v782, %v783
    %v785 = vrot.slane %v784, 2
    %v786 = vmax.f32 %v784, %v785
    %v787 = vrot.slane %v786, 1
    %v788 = vmax.f32 %v786, %v787
    %v789 = vsel %vm746, %v128, -inf
    %v790 = vrot.slane %v789, 4
    %v791 = vmax.f32 %v789, %v790
    %v792 = vrot.slane %v791, 2
    %v793 = vmax.f32 %v791, %v792
    %v794 = vrot.slane %v793, 1
    %v795 = vmax.f32 %v793, %v794
    %v796 = vsel %vm746, %v131, -inf
    %v797 = vrot.slane %v796, 4
    %v798 = vmax.f32 %v796, %v797
    %v799 = vrot.slane %v798, 2
    %v800 = vmax.f32 %v798, %v799
    %v801 = vrot.slane %v800, 1
    %v802 = vmax.f32 %v800, %v801
    %v803 = vsel %vm746, %v134, -inf
    %v804 = vrot.slane %v803, 4
    %v805 = vmax.f32 %v803, %v804
    %v806 = vrot.slane %v805, 2
    %v807 = vmax.f32 %v805, %v806
    %v808 = vrot.slane %v807, 1
    %v809 = vmax.f32 %v807, %v808
    %v810 = vsel %vm746, %v137, -inf
    %v811 = vrot.slane %v810, 4
    %v812 = vmax.f32 %v810, %v811
    %v813 = vrot.slane %v812, 2
    %v814 = vmax.f32 %v812, %v813
    %v815 = vrot.slane %v814, 1
    %v816 = vmax.f32 %v814, %v815
    %v817 = vsel %vm746, %v140, -inf
    %v818 = vrot.slane %v817, 4
    %v819 = vmax.f32 %v817, %v818
    %v820 = vrot.slane %v819, 2
    %v821 = vmax.f32 %v819, %v820
    %v822 = vrot.slane %v821, 1
    %v823 = vmax.f32 %v821, %v822
    %v824 = vsel %vm746, %v143, -inf
    %v825 = vrot.slane %v824, 4
    %v826 = vmax.f32 %v824, %v825
    %v827 = vrot.slane %v826, 2
    %v828 = vmax.f32 %v826, %v827
    %v829 = vrot.slane %v828, 1
    %v830 = vmax.f32 %v828, %v829
    %v831 = vsel %vm746, %v146, -inf
    %v832 = vrot.slane %v831, 4
    %v833 = vmax.f32 %v831, %v832
    %v834 = vrot.slane %v833, 2
    %v835 = vmax.f32 %v833, %v834
    %v836 = vrot.slane %v835, 1
    %v837 = vmax.f32 %v835, %v836
    %v838 = vsel %vm746, %v149, -inf
    %v839 = vrot.slane %v838, 4
    %v840 = vmax.f32 %v838, %v839
    %v841 = vrot.slane %v840, 2
    %v842 = vmax.f32 %v840, %v841
    %v843 = vrot.slane %v842, 1
    %v844 = vmax.f32 %v842, %v843
    %v845 = vsel %vm746, %v152, -inf
    %v846 = vrot.slane %v845, 4
    %v847 = vmax.f32 %v845, %v846
    %v848 = vrot.slane %v847, 2
    %v849 = vmax.f32 %v847, %v848
    %v850 = vrot.slane %v849, 1
    %v851 = vmax.f32 %v849, %v850
    %v852 = vsel %vm746, %v155, -inf
    %v853 = vrot.slane %v852, 4
    %v854 = vmax.f32 %v852, %v853
    %v855 = vrot.slane %v854, 2
    %v856 = vmax.f32 %v854, %v855
    %v857 = vrot.slane %v856, 1
    %v858 = vmax.f32 %v856, %v857
    %v859 = vperm.slane %v37, 2
    %861 = vrot.lane.b32.xlu0 %v859, 16
    %v862 = vpop.permute.xlu0 %861
    %v864 = vadd.f32 %v753, %v862
    %v865 = vadd.f32 %v760, %v862
    %v866 = vadd.f32 %v767, %v862
    %v867 = vadd.f32 %v774, %v862
    %v868 = vadd.f32 %v781, %v862
    %v869 = vadd.f32 %v788, %v862
    %v870 = vadd.f32 %v795, %v862
    %v871 = vadd.f32 %v802, %v862
    %v872 = vadd.f32 %v809, %v862
    %v873 = vadd.f32 %v816, %v862
    %v874 = vadd.f32 %v823, %v862
    %v875 = vadd.f32 %v830, %v862
    %v876 = vadd.f32 %v837, %v862
    %v877 = vadd.f32 %v844, %v862
    %v878 = vadd.f32 %v851, %v862
    %v879 = vadd.f32 %v858, %v862
    %vm880 = vcmask 126976
    %v881 = vsel %vm880, %v699, -inf
    %v882 = vrot.slane %v881, 4
    %v883 = vmax.f32 %v881, %v882
    %v884 = vrot.slane %v883, 2
    %v885 = vmax.f32 %v883, %v884
    %v886 = vrot.slane %v885, 1
    %v887 = vmax.f32 %v885, %v886
    %v888 = vsel %vm880, %v702, -inf
    %v889 = vrot.slane %v888, 4
    %v890 = vmax.f32 %v888, %v889
    %v891 = vrot.slane %v890, 2
    %v892 = vmax.f32 %v890, %v891
    %v893 = vrot.slane %v892, 1
    %v894 = vmax.f32 %v892, %v893
    %v895 = vsel %vm880, %v705, -inf
    %v896 = vrot.slane %v895, 4
    %v897 = vmax.f32 %v895, %v896
    %v898 = vrot.slane %v897, 2
    %v899 = vmax.f32 %v897, %v898
    %v900 = vrot.slane %v899, 1
    %v901 = vmax.f32 %v899, %v900
    %v902 = vsel %vm880, %v708, -inf
    %v903 = vrot.slane %v902, 4
    %v904 = vmax.f32 %v902, %v903
    %v905 = vrot.slane %v904, 2
    %v906 = vmax.f32 %v904, %v905
    %v907 = vrot.slane %v906, 1
    %v908 = vmax.f32 %v906, %v907
    %v909 = vsel %vm880, %v711, -inf
    %v910 = vrot.slane %v909, 4
    %v911 = vmax.f32 %v909, %v910
    %v912 = vrot.slane %v911, 2
    %v913 = vmax.f32 %v911, %v912
    %v914 = vrot.slane %v913, 1
    %v915 = vmax.f32 %v913, %v914
    %v916 = vsel %vm880, %v714, -inf
    %v917 = vrot.slane %v916, 4
    %v918 = vmax.f32 %v916, %v917
    %v919 = vrot.slane %v918, 2
    %v920 = vmax.f32 %v918, %v919
    %v921 = vrot.slane %v920, 1
    %v922 = vmax.f32 %v920, %v921
    %v923 = vsel %vm880, %v717, -inf
    %v924 = vrot.slane %v923, 4
    %v925 = vmax.f32 %v923, %v924
    %v926 = vrot.slane %v925, 2
    %v927 = vmax.f32 %v925, %v926
    %v928 = vrot.slane %v927, 1
    %v929 = vmax.f32 %v927, %v928
    %v930 = vsel %vm880, %v720, -inf
    %v931 = vrot.slane %v930, 4
    %v932 = vmax.f32 %v930, %v931
    %v933 = vrot.slane %v932, 2
    %v934 = vmax.f32 %v932, %v933
    %v935 = vrot.slane %v934, 1
    %v936 = vmax.f32 %v934, %v935
    %v937 = vsel %vm880, %v723, -inf
    %v938 = vrot.slane %v937, 4
    %v939 = vmax.f32 %v937, %v938
    %v940 = vrot.slane %v939, 2
    %v941 = vmax.f32 %v939, %v940
    %v942 = vrot.slane %v941, 1
    %v943 = vmax.f32 %v941, %v942
    %v944 = vsel %vm880, %v726, -inf
    %v945 = vrot.slane %v944, 4
    %v946 = vmax.f32 %v944, %v945
    %v947 = vrot.slane %v946, 2
    %v948 = vmax.f32 %v946, %v947
    %v949 = vrot.slane %v948, 1
    %v950 = vmax.f32 %v948, %v949
    %v951 = vsel %vm880, %v729, -inf
    %v952 = vrot.slane %v951, 4
    %v953 = vmax.f32 %v951, %v952
    %v954 = vrot.slane %v953, 2
    %v955 = vmax.f32 %v953, %v954
    %v956 = vrot.slane %v955, 1
    %v957 = vmax.f32 %v955, %v956
    %v958 = vsel %vm880, %v732, -inf
    %v959 = vrot.slane %v958, 4
    %v960 = vmax.f32 %v958, %v959
    %v961 = vrot.slane %v960, 2
    %v962 = vmax.f32 %v960, %v961
    %v963 = vrot.slane %v962, 1
    %v964 = vmax.f32 %v962, %v963
    %v965 = vsel %vm880, %v735, -inf
    %v966 = vrot.slane %v965, 4
    %v967 = vmax.f32 %v965, %v966
    %v968 = vrot.slane %v967, 2
    %v969 = vmax.f32 %v967, %v968
    %v970 = vrot.slane %v969, 1
    %v971 = vmax.f32 %v969, %v970
    %v972 = vsel %vm880, %v738, -inf
    %v973 = vrot.slane %v972, 4
    %v974 = vmax.f32 %v972, %v973
    %v975 = vrot.slane %v974, 2
    %v976 = vmax.f32 %v974, %v975
    %v977 = vrot.slane %v976, 1
    %v978 = vmax.f32 %v976, %v977
    %v979 = vsel %vm880, %v741, -inf
    %v980 = vrot.slane %v979, 4
    %v981 = vmax.f32 %v979, %v980
    %v982 = vrot.slane %v981, 2
    %v983 = vmax.f32 %v981, %v982
    %v984 = vrot.slane %v983, 1
    %v985 = vmax.f32 %v983, %v984
    %v986 = vsel %vm880, %v744, -inf
    %v987 = vrot.slane %v986, 4
    %v988 = vmax.f32 %v986, %v987
    %v989 = vrot.slane %v988, 2
    %v990 = vmax.f32 %v988, %v989
    %v991 = vrot.slane %v990, 1
    %v992 = vmax.f32 %v990, %v991
    %v993 = vperm.slane %v37, 3
    %v994 = vadd.f32 %v887, %v993
    %v995 = vadd.f32 %v894, %v993
    %v996 = vadd.f32 %v901, %v993
    %v997 = vadd.f32 %v908, %v993
    %v998 = vadd.f32 %v915, %v993
    %v999 = vadd.f32 %v922, %v993
    %v1000 = vadd.f32 %v929, %v993
    %v1001 = vadd.f32 %v936, %v993
    %v1002 = vadd.f32 %v943, %v993
    %v1003 = vadd.f32 %v950, %v993
    %v1004 = vadd.f32 %v957, %v993
    %v1005 = vadd.f32 %v964, %v993
    %v1006 = vadd.f32 %v971, %v993
    %v1007 = vadd.f32 %v978, %v993
    %v1008 = vadd.f32 %v985, %v993
    %v1009 = vadd.f32 %v992, %v993
    %1026 = vrot.lane.b32.xlu0 %v994, 16
    %v1027 = vpop.permute.xlu0 %1026
    %1028 = vrot.lane.b32.xlu0 %v995, 16
    %v1029 = vpop.permute.xlu0 %1028
    %1030 = vrot.lane.b32.xlu0 %v996, 16
    %v1031 = vpop.permute.xlu0 %1030
    %1032 = vrot.lane.b32.xlu0 %v997, 16
    %v1033 = vpop.permute.xlu0 %1032
    %1034 = vrot.lane.b32.xlu0 %v998, 16
    %v1035 = vpop.permute.xlu0 %1034
    %1036 = vrot.lane.b32.xlu0 %v999, 16
    %v1037 = vpop.permute.xlu0 %1036
    %1038 = vrot.lane.b32.xlu0 %v1000, 16
    %v1039 = vpop.permute.xlu0 %1038
    %1040 = vrot.lane.b32.xlu0 %v1001, 16
    %v1041 = vpop.permute.xlu0 %1040
    %1042 = vrot.lane.b32.xlu0 %v1002, 16
    %v1043 = vpop.permute.xlu0 %1042
    %1044 = vrot.lane.b32.xlu0 %v1003, 16
    %v1045 = vpop.permute.xlu0 %1044
    %1046 = vrot.lane.b32.xlu0 %v1004, 16
    %v1047 = vpop.permute.xlu0 %1046
    %1048 = vrot.lane.b32.xlu0 %v1005, 16
    %v1049 = vpop.permute.xlu0 %1048
    %1050 = vrot.lane.b32.xlu0 %v1006, 16
    %v1051 = vpop.permute.xlu0 %1050
    %1052 = vrot.lane.b32.xlu0 %v1007, 16
    %v1053 = vpop.permute.xlu0 %1052
    %1054 = vrot.lane.b32.xlu0 %v1008, 16
    %v1055 = vpop.permute.xlu0 %1054
    %1056 = vrot.lane.b32.xlu0 %v1009, 16
    %v1057 = vpop.permute.xlu0 %1056
    %v1074 = vmax.f32 %v864, %v1027
    %v1075 = vmax.f32 %v865, %v1029
    %v1076 = vmax.f32 %v866, %v1031
    %v1077 = vmax.f32 %v867, %v1033
    %v1078 = vmax.f32 %v868, %v1035
    %v1079 = vmax.f32 %v869, %v1037
    %v1080 = vmax.f32 %v870, %v1039
    %v1081 = vmax.f32 %v871, %v1041
    %v1082 = vmax.f32 %v872, %v1043
    %v1083 = vmax.f32 %v873, %v1045
    %v1084 = vmax.f32 %v874, %v1047
    %v1085 = vmax.f32 %v875, %v1049
    %v1086 = vmax.f32 %v876, %v1051
    %v1087 = vmax.f32 %v877, %v1053
    %v1088 = vmax.f32 %v878, %v1055
    %v1089 = vmax.f32 %v879, %v1057
    %v1090 = vmax.f32 %v1074, 0.0
    %v1091 = vmax.f32 %v1075, 0.0
    %v1092 = vmax.f32 %v1076, 0.0
    %v1093 = vmax.f32 %v1077, 0.0
    %v1094 = vmax.f32 %v1078, 0.0
    %v1095 = vmax.f32 %v1079, 0.0
    %v1096 = vmax.f32 %v1080, 0.0
    %v1097 = vmax.f32 %v1081, 0.0
    %v1098 = vmax.f32 %v1082, 0.0
    %v1099 = vmax.f32 %v1083, 0.0
    %v1100 = vmax.f32 %v1084, 0.0
    %v1101 = vmax.f32 %v1085, 0.0
    %v1102 = vmax.f32 %v1086, 0.0
    %v1103 = vmax.f32 %v1087, 0.0
    %v1104 = vmax.f32 %v1088, 0.0
    %v1105 = vmax.f32 %v1089, 0.0
    %v1122 = vrot.slane %v1091, 7
    %vm1123 = vcmask 1041409
    %v1124 = vsel %vm1123, %v1122, %v1090
    %v1125 = vrot.slane %v1092, 6
    %vm1126 = vcmask 1042434
    %v1127 = vsel %vm1126, %v1125, %v1124
    %v1128 = vrot.slane %v1093, 5
    %vm1129 = vcmask 1043459
    %v1130 = vsel %vm1129, %v1128, %v1127
    %v1131 = vrot.slane %v1094, 4
    %vm1132 = vcmask 1044484
    %v1133 = vsel %vm1132, %v1131, %v1130
    %v1134 = vrot.slane %v1095, 3
    %vm1135 = vcmask 1045509
    %v1136 = vsel %vm1135, %v1134, %v1133
    %v1137 = vrot.slane %v1096, 2
    %vm1138 = vcmask 1046534
    %v1139 = vsel %vm1138, %v1137, %v1136
    %v1140 = vrot.slane %v1097, 1
    %vm1141 = vcmask 1047559
    %v1142 = vsel %vm1141, %v1140, %v1139
    %v1143 = vrot.slane %v1099, 7
    %v1144 = vsel %vm1123, %v1143, %v1098
    %v1145 = vrot.slane %v1100, 6
    %v1146 = vsel %vm1126, %v1145, %v1144
    %v1147 = vrot.slane %v1101, 5
    %v1148 = vsel %vm1129, %v1147, %v1146
    %v1149 = vrot.slane %v1102, 4
    %v1150 = vsel %vm1132, %v1149, %v1148
    %v1151 = vrot.slane %v1103, 3
    %v1152 = vsel %vm1135, %v1151, %v1150
    %v1153 = vrot.slane %v1104, 2
    %v1154 = vsel %vm1138, %v1153, %v1152
    %v1155 = vrot.slane %v1105, 1
    %v1156 = vsel %vm1141, %v1155, %v1154
    %1157 = vrot.lane.b32.xlu0 %v1142, 112
    %v1158 = vpop.permute.xlu0 %1157
    %1159 = vrot.lane.b32.xlu0 %v1156, 112
    %v1160 = vpop.permute.xlu0 %1159
    %1163 = vst.msk [vmem:[#allocation2] sm:$0xff] %vm632, %v1158
    %1164 = vst.msk [vmem:[#allocation2 + $0x8] sm:$0xff] %vm632, %v1160
    // Predicated region
    $region22: #{tpu_custom_call.1} parent=1 // pred_check
      _
    $region23: #{tpu_custom_call.1} parent=1 // pred_check_branch
      %1166 = sbr.rel (0) target = $region25
    $region24: #{tpu_custom_call.1} parent=1 // pred_region
      %1168 = vsyncadd [#allocation3], 0
      %s1169 = sshll.u32 [#allocation2], 4
      %s1170 = int_to_ptr.vmem [resolvable:$true] %s1169
      %s1171 = sshll.u32 %s5, 4
      %s1172 = int_to_ptr.hbm [resolvable:$true] %s1171
      %1177 = dma.vmem_to_hbm [thread:$0]  %s1170, 256, %s1172, [#allocation3], 128, 128, 8
    $region25: #{tpu_custom_call.1} parent=1 // pred_fallthru
      _
    // Predicated region
    $region26: #{tpu_custom_call.1} parent=1 // pred_check
      _
    $region27: #{tpu_custom_call.1} parent=1 // pred_check_branch
      %1179 = sbr.rel (0) target = $region29
    $region28: #{tpu_custom_call.1} parent=1 // pred_region
      %1181 = dma.done [#allocation3], 256
    $region29: #{tpu_custom_call.1} parent=1 // pred_fallthru
      _
    %1182 = vsyncpa [#allocation3], 1

</llo_original>
